<compile_context>
chip_gen: v7x
topology: tpu7x:2x2x1
jax: 0.10.0
libtpu: 0.0.40
codegen_flags: <defaults>
</compile_context>

<pallas_src>
import numpy as np
import jax
import jax.numpy as jnp
from jax.experimental import pallas as pl
from jax.experimental.pallas import tpu as pltpu

NEG_INF = -1e9


def _vmem_limit(block_bytes):
    """Scoped-VMEM request: double-buffered blocks + slack, clamped to
    [32 MiB, 64 MiB] (>= every generation's scoped default, <= v7x physical)."""
    need = 2 * int(block_bytes) + (4 << 20)
    return int(min(max(need, 32 << 20), 64 << 20))


def _choose_tile(n, target, align):
    """Largest tile t <= target that divides n with t % align == 0, else n."""
    if n <= target:
        return n
    t = (target // align) * align
    while t >= align:
        if n % t == 0:
            return t
        t -= align
    return n


def _elu(x):
    return jnp.where(x > 0, x, jnp.exp(jnp.minimum(x, 0.0)) - 1.0)


# ---------------------------------------------------------------------------
# Shared projection kernel: everything that does NOT depend on the edge mask
# (or on adj) is computed exactly once here.
#   seq = x @ w1 + b1             (B, S, nhid)
#   res = x @ wres + bres         (B, S, nhid)
#   f2[b,i] = seq[b,i] . a2 + ba2 -> (B, S, 1)  (VPU multiply + lane reduce)
#   f1[b,j] = seq[b,j] . a1 + ba1 -> (B, 1, S)  (single M=1 batched matmul
#                                                gives row/lane layout directly)
# ---------------------------------------------------------------------------
def _proj_common(x_ref, w1_ref, b1_ref, a1_ref, a2_ref, ba1_ref, ba2_ref,
                 wres_ref, bres_ref):
    B, S, F = x_ref.shape
    nhid = w1_ref.shape[1]
    x2 = x_ref[...].reshape(B * S, F)                       # batch folded into M
    seq = (jnp.dot(x2, w1_ref[...], preferred_element_type=jnp.float32)
           + b1_ref[...]).reshape(B, S, nhid)
    res = (jnp.dot(x2, wres_ref[...], preferred_element_type=jnp.float32)
           + bres_ref[...]).reshape(B, S, nhid)
    # f2 via VPU multiply + lane reduction (no degenerate N=1 MXU matmul).
    f2 = jnp.sum(seq * a2_ref[...], axis=-1, keepdims=True) + ba2_ref[...]
    # f1 in row (lane) layout: one M=1 batched matmul, executed once.
    a1b = jnp.broadcast_to(a1_ref[...].reshape(1, 1, nhid), (B, 1, nhid))
    f1 = jnp.einsum('bqd,bkd->bqk', a1b, seq,
                    preferred_element_type=jnp.float32) + ba1_ref[...]
    return seq, res, f1, f2


def _proj_intra_kernel(x_ref, w1_ref, b1_ref, a1_ref, a2_ref, ba1_ref, ba2_ref,
                       wres_ref, bres_ref, seq_ref, res_ref, base_ref):
    seq, res, f1, f2 = _proj_common(x_ref, w1_ref, b1_ref, a1_ref, a2_ref,
                                    ba1_ref, ba2_ref, wres_ref, bres_ref)
    seq_ref[...] = seq
    res_ref[...] = res
    z = f2 + f1                                   # (B,S,S): [b,i,j]=f2[b,i]+f1[b,j]
    base_ref[...] = jnp.where(z > 0, z, 0.01 * z)  # LeakyReLU (torch default 0.01)


def _proj_industry_kernel(x_ref, w1_ref, b1_ref, a1_ref, a2_ref, ba1_ref,
                          ba2_ref, wres_ref, bres_ref,
                          seq_ref, res_ref, f1_ref, f2_ref):
    seq, res, f1, f2 = _proj_common(x_ref, w1_ref, b1_ref, a1_ref, a2_ref,
                                    ba1_ref, ba2_ref, wres_ref, bres_ref)
    seq_ref[...] = seq
    res_ref[...] = res
    f1_ref[...] = f1
    f2_ref[...] = f2


def _proj_args(x, p):
    nhid = p["w1"].shape[1]
    return (x, p["w1"], p["b1"],
            p["a1"].reshape(1, nhid), p["a2"].reshape(1, nhid),
            p["ba1"].reshape(1, 1), p["ba2"].reshape(1, 1),
            p["wres"], p["bres"])


def project_intra(x, p):
    B, S, F = x.shape
    nhid = p["w1"].shape[1]
    bytes_ = 4 * (B * S * F + 2 * F * nhid + 4 * B * S * nhid + B * S * S)
    fn = pl.pallas_call(
        _proj_intra_kernel,
        out_shape=(jax.ShapeDtypeStruct((B, S, nhid), jnp.float32),
                   jax.ShapeDtypeStruct((B, S, nhid), jnp.float32),
                   jax.ShapeDtypeStruct((B, S, S), jnp.float32)),
        compiler_params=pltpu.CompilerParams(vmem_limit_bytes=_vmem_limit(bytes_)),
    )
    return fn(*_proj_args(x, p))


def project_industry(x, p):
    B, S, F = x.shape
    nhid = p["w1"].shape[1]
    bytes_ = 4 * (B * S * F + 2 * F * nhid + 4 * B * S * nhid + 2 * B * S)
    fn = pl.pallas_call(
        _proj_industry_kernel,
        out_shape=(jax.ShapeDtypeStruct((B, S, nhid), jnp.float32),
                   jax.ShapeDtypeStruct((B, S, nhid), jnp.float32),
                   jax.ShapeDtypeStruct((B, 1, S), jnp.float32),
                   jax.ShapeDtypeStruct((B, S, 1), jnp.float32)),
        compiler_params=pltpu.CompilerParams(vmem_limit_bytes=_vmem_limit(bytes_)),
    )
    return fn(*_proj_args(x, p))


# ---------------------------------------------------------------------------
# Intra-hyperedge attention: grid=(E,).  Per edge: mask -> softmax ->
# coefs @ seq -> +res -> ELU -> scattered write + masked max-pool.
# The logits base / seq / res blocks are edge-invariant (constant index_map),
# so the pipeline keeps them resident in VMEM across the whole edge loop.
# ---------------------------------------------------------------------------
def _edges_kernel(mrow_ref, mcol_ref, base_ref, seq_ref, res_ref,
                  out_ref, pool_ref):
    mrow = mrow_ref[...]                          # (1, 1, S) softmax-column mask
    mcol = mcol_ref[...]                          # (1, S, 1) output-row mask
    logits = jnp.where(mrow > 0, base_ref[...], NEG_INF)      # (B, S, S)
    m = jnp.max(logits, axis=-1, keepdims=True)
    e = jnp.exp(logits - m)
    coefs = e * pl.reciprocal(jnp.sum(e, axis=-1, keepdims=True), approx=True)
    vals = jnp.einsum('bqk,bkd->bqd', coefs, seq_ref[...],
                      preferred_element_type=jnp.float32)
    act = _elu(vals + res_ref[...])
    out_ref[0] = act * mcol                       # scattered single_edge rows
    # NOTE: an empty hyperedge (no members) would pool to NEG_INF here; the
    # torch reference would raise instead.  Edges are non-empty by construction.
    pool_ref[0] = jnp.max(jnp.where(mcol > 0, act, NEG_INF), axis=1)


def intra_hyperedge_attn(memb_row, memb_col, base, seq, res):
    E = memb_row.shape[0]
    B, S, nhid = seq.shape
    bytes_ = 4 * (2 * S + B * S * S + 3 * B * S * nhid + 2 * B * S * nhid + B * nhid)
    fn = pl.pallas_call(
        _edges_kernel,
        out_shape=(jax.ShapeDtypeStruct((E, B, S, nhid), jnp.float32),
                   jax.ShapeDtypeStruct((E, B, nhid), jnp.float32)),
        grid=(E,),
        in_specs=[
            pl.BlockSpec((1, 1, S), lambda e: (e, 0, 0)),        # column mask
            pl.BlockSpec((1, S, 1), lambda e: (e, 0, 0)),        # row mask
            pl.BlockSpec((B, S, S), lambda e: (0, 0, 0)),        # logits base (resident)
            pl.BlockSpec((B, S, nhid), lambda e: (0, 0, 0)),     # seq (resident)
            pl.BlockSpec((B, S, nhid), lambda e: (0, 0, 0)),     # res (resident)
        ],
        out_specs=(pl.BlockSpec((1, B, S, nhid), lambda e: (e, 0, 0, 0)),
                   pl.BlockSpec((1, B, nhid), lambda e: (e, 0, 0))),
        compiler_params=pltpu.CompilerParams(
            dimension_semantics=("parallel",),
            vmem_limit_bytes=_vmem_limit(bytes_)),
    )
    return fn(memb_row, memb_col, base, seq, res)


# ---------------------------------------------------------------------------
# Industry head (Attn_head_adj): flash-style online softmax tiled over
# (batch, q-tile, k-tile); logits are rebuilt per tile from the tiny f1/f2
# projections so no (B,S,S) tensor is ever materialized.
# ---------------------------------------------------------------------------
def _industry_kernel(f1_ref, f2_ref, adj_ref, seq_ref, res_ref, out_ref,
                     m_sc, l_sc, acc_sc):
    ki = pl.program_id(2)

    @pl.when(ki == 0)
    def _():
        m_sc[...] = jnp.full(m_sc.shape, -jnp.inf, jnp.float32)
        l_sc[...] = jnp.zeros(l_sc.shape, jnp.float32)
        acc_sc[...] = jnp.zeros(acc_sc.shape, jnp.float32)

    z = f2_ref[...] + f1_ref[...]                 # (1,tq,1)+(1,1,tk) -> (1,tq,tk)
    z = jnp.where(z > 0, z, 0.01 * z)             # LeakyReLU
    z = jnp.where(adj_ref[...] > 0, z, NEG_INF)   # adjacency mask
    m_new = jnp.maximum(m_sc[...], jnp.max(z, axis=-1, keepdims=True))
    alpha = jnp.exp(m_sc[...] - m_new)
    p = jnp.exp(z - m_new)
    l_sc[...] = alpha * l_sc[...] + jnp.sum(p, axis=-1, keepdims=True)
    acc_sc[...] = alpha * acc_sc[...] + jnp.einsum(
        'bqk,bkd->bqd', p, seq_ref[...], preferred_element_type=jnp.float32)
    m_sc[...] = m_new

    @pl.when(ki == pl.num_programs(2) - 1)
    def _():
        pre = acc_sc[...] * pl.reciprocal(l_sc[...], approx=True) + res_ref[...]
        out_ref[...] = _elu(pre)


def industry_attn(f1, f2, adj3, seq, res):
    B, S, nhid = seq.shape
    tq = _choose_tile(S, 256, 8)
    tk = _choose_tile(S, 512, 128)
    bytes_ = 4 * (tk + tq + tq * tk + tk * nhid + 3 * tq * nhid + 2 * tq)
    fn = pl.pallas_call(
        _industry_kernel,
        out_shape=jax.ShapeDtypeStruct((B, S, nhid), jnp.float32),
        grid=(B, S // tq, S // tk),
        in_specs=[
            pl.BlockSpec((1, 1, tk), lambda b, qi, ki: (b, 0, ki)),      # f1
            pl.BlockSpec((1, tq, 1), lambda b, qi, ki: (b, qi, 0)),      # f2
            pl.BlockSpec((1, tq, tk), lambda b, qi, ki: (0, qi, ki)),    # adj
            pl.BlockSpec((1, tk, nhid), lambda b, qi, ki: (b, ki, 0)),   # seq (V)
            pl.BlockSpec((1, tq, nhid), lambda b, qi, ki: (b, qi, 0)),   # res
        ],
        out_specs=pl.BlockSpec((1, tq, nhid), lambda b, qi, ki: (b, qi, 0)),
        scratch_shapes=[pltpu.VMEM((1, tq, 1), jnp.float32),      # m
                        pltpu.VMEM((1, tq, 1), jnp.float32),      # l
                        pltpu.VMEM((1, tq, nhid), jnp.float32)],  # acc
        compiler_params=pltpu.CompilerParams(
            dimension_semantics=("parallel", "parallel", "arbitrary"),
            vmem_limit_bytes=_vmem_limit(bytes_)),
    )
    return fn(f1, f2, adj3, seq, res)


# ---------------------------------------------------------------------------
# Parameters + top-level forward (mirrors hyperedge_attn.forward)
# ---------------------------------------------------------------------------
def init_attn_head_params(key, nfeat, nhid):
    ks = jax.random.split(key, 8)
    rnd = lambda k, shape: 0.1 * jax.random.normal(k, shape, jnp.float32)
    return dict(
        w1=rnd(ks[0], (nfeat, nhid)),
        b1=rnd(ks[1], (1, nhid)),
        a1=rnd(ks[2], (1, 1, nhid)),
        ba1=rnd(ks[3], (1, 1, 1)),
        a2=rnd(ks[4], (nhid, 1)),
        ba2=rnd(ks[5], (1, 1, 1)),
        wres=rnd(ks[6], (nfeat, nhid)),
        bres=rnd(ks[7], (1, nhid)),
    )


def hyperedge_attn_forward(x, H, adj, nhid, params_intra, params_adj):
    """x: (B,S,F) f32; H: (S,E) 0/1 incidence (static); adj: (S,S) f32.
    returns (all_hyperedge_fts (E,B,S,nhid), hyperedge_fts (B,E,nhid),
             industry_tensor (B,S,nhid))."""
    del nhid  # kept for signature parity with the torch module
    B, S, F = x.shape
    Hn = np.asarray(H, np.float32)
    E = Hn.shape[1]
    memb = jnp.asarray(Hn.T, jnp.float32)                    # (E, S)
    memb_row = memb.reshape(E, 1, S)
    memb_col = memb.reshape(E, S, 1)

    # Industry head: hoisted projections + flash-style tiled online softmax.
    seq_a, res_a, f1_a, f2_a = project_industry(x, params_adj)
    adj3 = jnp.asarray(adj, jnp.float32).reshape(1, S, S)
    industry_tensor = industry_attn(f1_a, f2_a, adj3, seq_a, res_a)

    # Intra-hyperedge heads: shared projections + logits base computed ONCE,
    # then a grid=(E,) kernel that only masks/softmaxes/aggregates per edge.
    seq_i, res_i, base_i = project_intra(x, params_intra)
    all_hyperedge_fts, pooled_ebh = intra_hyperedge_attn(memb_row, memb_col,
                                                         base_i, seq_i, res_i)
    hyperedge_fts = jnp.transpose(pooled_ebh, (1, 0, 2))     # (B, E, nhid)
    return all_hyperedge_fts, hyperedge_fts, industry_tensor


# ---------------- pure-JAX (XLA) reference for validation ----------------
def _attn_head_ref(x, col_mask, p):
    seq = jnp.einsum('bnf,fh->bnh', x, p["w1"]) + p["b1"][0]
    f1 = jnp.einsum('bnh,h->bn', seq, p["a1"][0, 0]) + p["ba1"][0, 0, 0]
    f2 = jnp.einsum('bnh,h->bn', seq, p["a2"][:, 0]) + p["ba2"][0, 0, 0]
    logits = f2[:, :, None] + f1[:, None, :]
    logits = jnp.where(logits > 0, logits, 0.01 * logits)
    logits = jnp.where(col_mask > 0, logits, NEG_INF)
    coefs = jax.nn.softmax(logits, axis=-1)
    vals = jnp.einsum('bij,bjh->bih', coefs, seq)
    res = jnp.einsum('bnf,fh->bnh', x, p["wres"]) + p["bres"][0]
    pre = vals + res
    return jnp.where(pre > 0, pre, jnp.exp(jnp.minimum(pre, 0.0)) - 1.0)


def _forward_ref(x, H, adj, nhid, params_intra, params_adj):
    B, S, F = x.shape
    Hn = np.asarray(H)
    industry = _attn_head_ref(x, jnp.asarray(adj, jnp.float32), params_adj)
    all_e, pools = [], []
    for i in range(Hn.shape[1]):
        idx = np.nonzero(Hn[:, i])[0]
        n = len(idx)
        out = _attn_head_ref(x[:, idx, :], jnp.ones((n, n), jnp.float32), params_intra)
        pools.append(jnp.max(out, axis=1, keepdims=True))
        all_e.append(jnp.zeros((B, S, nhid), jnp.float32).at[:, idx, :].set(out))
    return jnp.stack(all_e, 0), jnp.concatenate(pools, axis=1), industry


if __name__ == "__main__":
    B, S, F, NHID, E = 2, 8, 16, 32, 3

    key = jax.random.PRNGKey(0)
    kx, kp1, kp2 = jax.random.split(key, 3)
    x = jax.random.normal(kx, (B, S, F), jnp.float32)

    # incidence matrix (stock x hyperedge), each edge has >= 2 member nodes
    H = np.zeros((S, E), np.float32)
    H[[0, 1, 2], 0] = 1.0
    H[[2, 3, 4, 5], 1] = 1.0
    H[[5, 6, 7], 2] = 1.0

    # industry adjacency: two blocks + self loops
    adj = np.zeros((S, S), np.float32)
    adj[:4, :4] = 1.0
    adj[4:, 4:] = 1.0
    np.fill_diagonal(adj, 1.0)

    params_intra = init_attn_head_params(kp1, F, NHID)   # self.intra_hpyeredge
    params_adj = init_attn_head_params(kp2, F, NHID)     # self.industry_tensor

    all_hfts, hfts, industry = hyperedge_attn_forward(x, H, adj, NHID,
                                                      params_intra, params_adj)
    jax.block_until_ready((all_hfts, hfts, industry))

    assert all_hfts.shape == (E, B, S, NHID)
    assert hfts.shape == (B, E, NHID)
    assert industry.shape == (B, S, NHID)

    # Cross-check against a pure-JAX reference of the same forward pass.
    ref_all, ref_h, ref_ind = _forward_ref(x, H, adj, NHID, params_intra, params_adj)
    np.testing.assert_allclose(np.asarray(all_hfts), np.asarray(ref_all), rtol=2e-2, atol=2e-2)
    np.testing.assert_allclose(np.asarray(hfts), np.asarray(ref_h), rtol=2e-2, atol=2e-2)
    np.testing.assert_allclose(np.asarray(industry), np.asarray(ref_ind), rtol=2e-2, atol=2e-2)

    print("KERNEL_OK")
</pallas_src>

<mosaic_0001>
module attributes {stable_mosaic.version = 11 : i64} {
  func.func @_proj_industry_kernel(%arg0: memref<2x8x16xf32, #tpu.memory_space<vmem>>, %arg1: memref<16x32xf32, #tpu.memory_space<vmem>>, %arg2: memref<1x32xf32, #tpu.memory_space<vmem>>, %arg3: memref<1x32xf32, #tpu.memory_space<vmem>>, %arg4: memref<1x32xf32, #tpu.memory_space<vmem>>, %arg5: memref<1x1xf32, #tpu.memory_space<vmem>>, %arg6: memref<1x1xf32, #tpu.memory_space<vmem>>, %arg7: memref<16x32xf32, #tpu.memory_space<vmem>>, %arg8: memref<1x32xf32, #tpu.memory_space<vmem>>, %arg9: memref<2x8x32xf32, #tpu.memory_space<vmem>>, %arg10: memref<2x8x32xf32, #tpu.memory_space<vmem>>, %arg11: memref<2x1x8xf32, #tpu.memory_space<vmem>>, %arg12: memref<2x8x1xf32, #tpu.memory_space<vmem>>) attributes {dimension_semantics = [], scalar_prefetch = 0 : i64, scratch_operands = 0 : i64, tpu.core_type = #tpu.core_type<tc>} {
    %c0 = arith.constant 0 : index
    %c0_0 = arith.constant 0 : index
    %c0_1 = arith.constant 0 : index
    %0 = vector.load %arg0[%c0, %c0_0, %c0_1] : memref<2x8x16xf32, #tpu.memory_space<vmem>>, vector<2x8x16xf32>
    %1 = vector.shape_cast %0 : vector<2x8x16xf32> to vector<16x16xf32>
    %c0_2 = arith.constant 0 : index
    %c0_3 = arith.constant 0 : index
    %2 = vector.load %arg1[%c0_2, %c0_3] : memref<16x32xf32, #tpu.memory_space<vmem>>, vector<16x32xf32>
    %cst = arith.constant dense<0.000000e+00> : vector<16x32xf32>
    %3 = tpu.matmul %1, %2, %cst {dimension_numbers = #tpu.dot_dimension_numbers<[1], [0], [0], [1], [0, 0, 1, 1], [], []>} : vector<16x16xf32>, vector<16x32xf32>, vector<16x32xf32> -> vector<16x32xf32>
    %c0_4 = arith.constant 0 : index
    %c0_5 = arith.constant 0 : index
    %4 = vector.load %arg2[%c0_4, %c0_5] : memref<1x32xf32, #tpu.memory_space<vmem>>, vector<1x32xf32>
    %5 = vector.broadcast %4 : vector<1x32xf32> to vector<16x32xf32>
    %6 = arith.addf %3, %5 : vector<16x32xf32>
    %7 = vector.shape_cast %6 : vector<16x32xf32> to vector<2x8x32xf32>
    %c0_6 = arith.constant 0 : index
    %c0_7 = arith.constant 0 : index
    %8 = vector.load %arg7[%c0_6, %c0_7] : memref<16x32xf32, #tpu.memory_space<vmem>>, vector<16x32xf32>
    %cst_8 = arith.constant dense<0.000000e+00> : vector<16x32xf32>
    %9 = tpu.matmul %1, %8, %cst_8 {dimension_numbers = #tpu.dot_dimension_numbers<[1], [0], [0], [1], [0, 0, 1, 1], [], []>} : vector<16x16xf32>, vector<16x32xf32>, vector<16x32xf32> -> vector<16x32xf32>
    %c0_9 = arith.constant 0 : index
    %c0_10 = arith.constant 0 : index
    %10 = vector.load %arg8[%c0_9, %c0_10] : memref<1x32xf32, #tpu.memory_space<vmem>>, vector<1x32xf32>
    %11 = vector.broadcast %10 : vector<1x32xf32> to vector<16x32xf32>
    %12 = arith.addf %9, %11 : vector<16x32xf32>
    %13 = vector.shape_cast %12 : vector<16x32xf32> to vector<2x8x32xf32>
    %c0_11 = arith.constant 0 : index
    %c0_12 = arith.constant 0 : index
    %14 = vector.load %arg4[%c0_11, %c0_12] : memref<1x32xf32, #tpu.memory_space<vmem>>, vector<1x32xf32>
    %15 = vector.shape_cast %14 : vector<1x32xf32> to vector<1x1x32xf32>
    %16 = vector.broadcast %15 : vector<1x1x32xf32> to vector<2x8x32xf32>
    %17 = arith.mulf %7, %16 : vector<2x8x32xf32>
    %cst_13 = arith.constant dense<0.000000e+00> : vector<2x8xf32>
    %18 = vector.multi_reduction <add>, %17, %cst_13 [2] : vector<2x8x32xf32> to vector<2x8xf32>
    %19 = vector.shape_cast %18 : vector<2x8xf32> to vector<2x8x1xf32>
    %c0_14 = arith.constant 0 : index
    %c0_15 = arith.constant 0 : index
    %20 = vector.load %arg6[%c0_14, %c0_15] : memref<1x1xf32, #tpu.memory_space<vmem>>, vector<1x1xf32>
    %21 = vector.shape_cast %20 : vector<1x1xf32> to vector<1x1x1xf32>
    %22 = vector.broadcast %21 : vector<1x1x1xf32> to vector<2x8x1xf32>
    %23 = arith.addf %19, %22 : vector<2x8x1xf32>
    %c0_16 = arith.constant 0 : index
    %c0_17 = arith.constant 0 : index
    %24 = vector.load %arg3[%c0_16, %c0_17] : memref<1x32xf32, #tpu.memory_space<vmem>>, vector<1x32xf32>
    %25 = vector.shape_cast %24 : vector<1x32xf32> to vector<1x1x32xf32>
    %26 = vector.shape_cast %25 : vector<1x1x32xf32> to vector<1x1x32xf32>
    %27 = vector.broadcast %26 : vector<1x1x32xf32> to vector<2x1x32xf32>
    "tpu.trace_start"() <{level = 10 : i32, message = "bqd,bkd->bqk"}> : () -> ()
    %cst_18 = arith.constant dense<0.000000e+00> : vector<2x1x8xf32>
    %28 = tpu.matmul %27, %7, %cst_18 {dimension_numbers = #tpu.dot_dimension_numbers<[2], [2], [1], [1], [0, 0, 0, 1, 1, 1], [0], [0]>} : vector<2x1x32xf32>, vector<2x8x32xf32>, vector<2x1x8xf32> -> vector<2x1x8xf32>
    "tpu.trace_stop"() : () -> ()
    %c0_19 = arith.constant 0 : index
    %c0_20 = arith.constant 0 : index
    %29 = vector.load %arg5[%c0_19, %c0_20] : memref<1x1xf32, #tpu.memory_space<vmem>>, vector<1x1xf32>
    %30 = vector.shape_cast %29 : vector<1x1xf32> to vector<1x1x1xf32>
    %31 = vector.broadcast %30 : vector<1x1x1xf32> to vector<2x1x8xf32>
    %32 = arith.addf %28, %31 : vector<2x1x8xf32>
    %c0_21 = arith.constant 0 : index
    %c0_22 = arith.constant 0 : index
    %c0_23 = arith.constant 0 : index
    %33 = vector.load %arg9[%c0_21, %c0_22, %c0_23] : memref<2x8x32xf32, #tpu.memory_space<vmem>>, vector<2x8x32xf32>
    tpu.vector_store %arg9[%c0_21, %c0_22, %c0_23], %7 {strides = array<i32>} : memref<2x8x32xf32, #tpu.memory_space<vmem>>, vector<2x8x32xf32>,
    %c0_24 = arith.constant 0 : index
    %c0_25 = arith.constant 0 : index
    %c0_26 = arith.constant 0 : index
    %34 = vector.load %arg10[%c0_24, %c0_25, %c0_26] : memref<2x8x32xf32, #tpu.memory_space<vmem>>, vector<2x8x32xf32>
    tpu.vector_store %arg10[%c0_24, %c0_25, %c0_26], %13 {strides = array<i32>} : memref<2x8x32xf32, #tpu.memory_space<vmem>>, vector<2x8x32xf32>,
    %c0_27 = arith.constant 0 : index
    %c0_28 = arith.constant 0 : index
    %c0_29 = arith.constant 0 : index
    %35 = vector.load %arg11[%c0_27, %c0_28, %c0_29] : memref<2x1x8xf32, #tpu.memory_space<vmem>>, vector<2x1x8xf32>
    tpu.vector_store %arg11[%c0_27, %c0_28, %c0_29], %32 {strides = array<i32>} : memref<2x1x8xf32, #tpu.memory_space<vmem>>, vector<2x1x8xf32>,
    %c0_30 = arith.constant 0 : index
    %c0_31 = arith.constant 0 : index
    %c0_32 = arith.constant 0 : index
    %36 = vector.load %arg12[%c0_30, %c0_31, %c0_32] : memref<2x8x1xf32, #tpu.memory_space<vmem>>, vector<2x8x1xf32>
    tpu.vector_store %arg12[%c0_30, %c0_31, %c0_32], %23 {strides = array<i32>} : memref<2x8x1xf32, #tpu.memory_space<vmem>>, vector<2x8x1xf32>,
    return
  }
}

</mosaic_0001>

<llo_original>
// kernel: tpu_custom_call.1
$region0: #{tpu_custom_call.1}
  #allocation0 [shape = 'u32[]', space=smem, size = 0x4, offset = 0x4, fixed_abs, tag = 'smem constant byte address 0x4 - core index']
  #allocation1 [shape = 'u32[144,128]{1,0:T(1,128)}', space=vmem, size = 0x12000, scoped, tag = 'internal scratch']
  #allocation2 [shape = 'f32[1,1]{1,0:T(1,128)S(1)}', space=vmem, size = 0x200, scoped, tag = 'scoped memory for tpu_custom_call.1']
  #allocation3 [shape = 'f32[1,1]{1,0:T(1,128)S(1)}', space=vmem, size = 0x200, scoped, tag = 'scoped memory for tpu_custom_call.1']
  %s0 = inlined_call_operand.hbm [shape: f32[2,8,16], index: 0, kind: input, shape index: {}]
  %s1 = inlined_call_operand.hbm [shape: f32[16,32], index: 1, kind: input, shape index: {}]
  %s2 = inlined_call_operand.vmem [shape: f32[1,32], index: 2, kind: input, shape index: {}]
  %s3 = inlined_call_operand.vmem [shape: f32[1,32], index: 3, kind: input, shape index: {}]
  %s4 = inlined_call_operand.vmem [shape: f32[1,32], index: 4, kind: input, shape index: {}]
  %s5 = inlined_call_operand.<no memory space> [shape: f32[1,1], index: 5, kind: input, shape index: {}]
  %s6 = inlined_call_operand.<no memory space> [shape: f32[1,1], index: 6, kind: input, shape index: {}]
  %s7 = inlined_call_operand.vmem [shape: f32[16,32], index: 7, kind: input, shape index: {}]
  %s8 = inlined_call_operand.vmem [shape: f32[1,32], index: 8, kind: input, shape index: {}]
  %s9 = inlined_call_operand.hbm [shape: f32[2,8,32], index: 9, kind: output, shape index: {0}]
  %s10 = inlined_call_operand.hbm [shape: f32[2,8,32], index: 10, kind: output, shape index: {1}]
  %s11 = inlined_call_operand.hbm [shape: f32[2,1,8], index: 11, kind: output, shape index: {2}]
  %s12 = inlined_call_operand.vmem [shape: f32[2,8,1], index: 12, kind: output, shape index: {3}]
  %13 = xla_tuple %s9, %s10, %s11, %s12
  %s14 = sld [smem:[#allocation0]]
  $region78: #{tpu_custom_call.1} parent=0
    _
  %s16 = ssub.s32 1, %s14
  %s17 = scalar_select 0, %s16, %s14
  %v18 = vstv %s5
  %19 = vst [vmem:[#allocation2] sm:$0x1] %v18
  %v20 = vstv %s6
  %21 = vst [vmem:[#allocation3] sm:$0x1] %v20
  $region1: #{tpu_custom_call.1} parent=0
    #allocation4 [shape = 'u8[8192]{0}', space=vmem, size = 0x2000, scoped, tag = 'input window, operand 0, single buffered']
    #allocation5 [shape = 's32[1]{0}', space=sflag, size = 0x4, scoped, tag = 'scoped memory for tpu_custom_call.1']
    #allocation6 [shape = 's32[1]{0}', space=sflag, size = 0x4, scoped, tag = 'scoped memory for tpu_custom_call.1']
    #allocation7 [shape = 'u8[8192]{0}', space=vmem, size = 0x2000, scoped, tag = 'input window, operand 1, single buffered']
    #allocation8 [shape = 's32[1]{0}', space=sflag, size = 0x4, scoped, tag = 'scoped memory for tpu_custom_call.1']
    #allocation9 [shape = 'u8[8192]{0}', space=vmem, size = 0x2000, scoped, tag = 'output window, operand 0, single buffered']
    #allocation10 [shape = 'u8[8192]{0}', space=vmem, size = 0x2000, scoped, tag = 'output window, operand 1, single buffered']
    #allocation11 [shape = 's32[1]{0}', space=sflag, size = 0x4, scoped, tag = 'scoped memory for tpu_custom_call.1']
    #allocation12 [shape = 'u8[1024]{0}', space=vmem, size = 0x400, scoped, tag = 'output window, operand 2, single buffered']
    %22 = vsyncpa [#allocation5], 0
    %23 = vsyncpa [#allocation8], 0
    %24 = vsyncpa [#allocation6], 0
    %25 = vsyncpa [#allocation11], 0
    // Predicated region
    $region2: #{tpu_custom_call.1} parent=1 // pred_check
      _
    $region3: #{tpu_custom_call.1} parent=1 // pred_check_branch
      %27 = sbr.rel (0) target = $region5
    $region4: #{tpu_custom_call.1} parent=1 // pred_region
      %s29 = ssub.s32 256, 256
      %30 = vsyncadd [#allocation5], %s29
      %s31 = sshll.u32 [#allocation4], 4
      %s32 = int_to_ptr.vmem [resolvable:$true] %s31
      %37 = dma.hbm_to_vmem [thread:$0]  %s0, 256, %s32, [#allocation5], 128, 128, 8
    $region5: #{tpu_custom_call.1} parent=1 // pred_fallthru
      _
    // Predicated region
    $region6: #{tpu_custom_call.1} parent=1 // pred_check
      _
    $region7: #{tpu_custom_call.1} parent=1 // pred_check_branch
      %39 = sbr.rel (0) target = $region9
    $region8: #{tpu_custom_call.1} parent=1 // pred_region
      %s41 = ssub.s32 256, 256
      %42 = vsyncadd [#allocation8], %s41
      %s43 = sshll.u32 [#allocation7], 4
      %s44 = int_to_ptr.vmem [resolvable:$true] %s43
      %49 = dma.hbm_to_vmem [thread:$0]  %s1, 256, %s44, [#allocation8], 128, 128, 8
    $region9: #{tpu_custom_call.1} parent=1 // pred_fallthru
      _
    // Predicated region
    $region10: #{tpu_custom_call.1} parent=1 // pred_check
      _
    $region11: #{tpu_custom_call.1} parent=1 // pred_check_branch
      %51 = sbr.rel (0) target = $region13
    $region12: #{tpu_custom_call.1} parent=1 // pred_region
      _
    $region13: #{tpu_custom_call.1} parent=1 // pred_fallthru
      _
    // Predicated region
    $region14: #{tpu_custom_call.1} parent=1 // pred_check
      _
    $region15: #{tpu_custom_call.1} parent=1 // pred_check_branch
      %53 = sbr.rel (0) target = $region17
    $region16: #{tpu_custom_call.1} parent=1 // pred_region
      _
    $region17: #{tpu_custom_call.1} parent=1 // pred_fallthru
      _
    // Predicated region
    $region18: #{tpu_custom_call.1} parent=1 // pred_check
      _
    $region19: #{tpu_custom_call.1} parent=1 // pred_check_branch
      %55 = sbr.rel (0) target = $region21
    $region20: #{tpu_custom_call.1} parent=1 // pred_region
      _
    $region21: #{tpu_custom_call.1} parent=1 // pred_fallthru
      _
    // Predicated region
    $region22: #{tpu_custom_call.1} parent=1 // pred_check
      _
    $region23: #{tpu_custom_call.1} parent=1 // pred_check_branch
      %57 = sbr.rel (0) target = $region25
    $region24: #{tpu_custom_call.1} parent=1 // pred_region
      _
    $region25: #{tpu_custom_call.1} parent=1 // pred_fallthru
      _
    // Predicated region
    $region26: #{tpu_custom_call.1} parent=1 // pred_check
      _
    $region27: #{tpu_custom_call.1} parent=1 // pred_check_branch
      %59 = sbr.rel (0) target = $region29
    $region28: #{tpu_custom_call.1} parent=1 // pred_region
      _
    $region29: #{tpu_custom_call.1} parent=1 // pred_fallthru
      _
    // Predicated region
    $region30: #{tpu_custom_call.1} parent=1 // pred_check
      _
    $region31: #{tpu_custom_call.1} parent=1 // pred_check_branch
      %61 = sbr.rel (0) target = $region33
    $region32: #{tpu_custom_call.1} parent=1 // pred_region
      _
    $region33: #{tpu_custom_call.1} parent=1 // pred_fallthru
      _
    // Predicated region
    $region34: #{tpu_custom_call.1} parent=1 // pred_check
      _
    $region35: #{tpu_custom_call.1} parent=1 // pred_check_branch
      %63 = sbr.rel (0) target = $region37
    $region36: #{tpu_custom_call.1} parent=1 // pred_region
      _
    $region37: #{tpu_custom_call.1} parent=1 // pred_fallthru
      _
    // Predicated region
    $region38: #{tpu_custom_call.1} parent=1 // pred_check
      _
    $region39: #{tpu_custom_call.1} parent=1 // pred_check_branch
      %65 = sbr.rel (0) target = $region41
    $region40: #{tpu_custom_call.1} parent=1 // pred_region
      %66 = dma.done [#allocation5], 256
    $region41: #{tpu_custom_call.1} parent=1 // pred_fallthru
      _
    // Predicated region
    $region42: #{tpu_custom_call.1} parent=1 // pred_check
      _
    $region43: #{tpu_custom_call.1} parent=1 // pred_check_branch
      %68 = sbr.rel (0) target = $region45
    $region44: #{tpu_custom_call.1} parent=1 // pred_region
      %69 = dma.done [#allocation8], 256
    $region45: #{tpu_custom_call.1} parent=1 // pred_fallthru
      _
    %v70 = vld [vmem:[#allocation4] sm:$0xff]
    %v71 = vld [vmem:[#allocation4 + $0x8] sm:$0xff]
    %v72 = vld [vmem:[#allocation7] sm:$0xff]
    %v73 = vld [vmem:[#allocation7 + $0x8] sm:$0xff]
    %v74 = vld [vmem:[%s2] sm:$0x1]
    %v76 = vlaneseq
    %v77 = vshrl.u32 %v76, 7
    %v78 = vsub.s32 0, %v77
    %v79 = vrot.slane %v74, %v78
    %vm81 = vcmask 130048
    %v83 = vsel %vm81, %v70, 0
    %v86 = vsel %vm81, %v71, 0
    %88 = vmatprep.subr.mxu0 0.0
    %89 = vmatpush1.msra.mxu0 %v72
    %90 = vmatprep.subr.mxu0 0.0
    %91 = vmatpush1.msra.mxu0 %v73
    %92 = vmatprep.subr.mxu0 0.0
    %93 = vmatpush1.msra.mxu0 0.0
    %94 = vmatprep.subr.mxu0 0.0
    %95 = vmatpush1.msra.mxu0 0.0
    %96 = vmatprep.subr.mxu0 0.0
    %97 = vmatpush1.msra.mxu0 0.0
    %98 = vmatprep.subr.mxu0 0.0
    %99 = vmatpush1.msra.mxu0 0.0
    %100 = vmatprep.subr.mxu0 0.0
    %101 = vmatpush1.msra.mxu0 0.0
    %102 = vmatprep.subr.mxu0 0.0
    %103 = vmatpush1.msra.mxu0 0.0
    %104 = vmatprep.subr.mxu0 0.0
    %105 = vmatpush1.msra.mxu0 0.0
    %106 = vmatprep.subr.mxu0 0.0
    %107 = vmatpush1.msra.mxu0 0.0
    %108 = vmatprep.subr.mxu0 0.0
    %109 = vmatpush1.msra.mxu0 0.0
    %110 = vmatprep.subr.mxu0 0.0
    %111 = vmatpush1.msra.mxu0 0.0
    %112 = vmatprep.subr.mxu0 0.0
    %113 = vmatpush1.msra.mxu0 0.0
    %114 = vmatprep.subr.mxu0 0.0
    %115 = vmatpush1.msra.mxu0 0.0
    %116 = vmatprep.subr.mxu0 0.0
    %117 = vmatpush1.msra.mxu0 0.0
    %118 = vmatprep.subr.mxu0 0.0
    %119 = vmatpush1.msra.mxu0 0.0
    %120 = vmatprep.subr.mxu0 0.0
    %121 = vmatpush1.msra.mxu0 0.0
    %122 = vmatprep.subr.mxu0 0.0
    %123 = vmatpush1.msra.mxu0 0.0
    %124 = vmatprep.subr.mxu0 0.0
    %125 = vmatpush1.msra.mxu0 0.0
    %126 = vmatprep.subr.mxu0 0.0
    %127 = vmatpush1.msra.mxu0 0.0
    %128 = vmatprep.subr.mxu0 0.0
    %129 = vmatpush1.msra.mxu0 0.0
    %130 = vmatprep.subr.mxu0 0.0
    %131 = vmatpush1.msra.mxu0 0.0
    %132 = vmatprep.subr.mxu0 0.0
    %133 = vmatpush1.msra.mxu0 0.0
    %134 = vmatprep.subr.mxu0 0.0
    %135 = vmatpush1.msra.mxu0 0.0
    %136 = vmatprep.subr.mxu0 0.0
    %137 = vmatpush1.msra.mxu0 0.0
    %138 = vmatprep.subr.mxu0 0.0
    %139 = vmatpush1.msra.mxu0 0.0
    %140 = vmatprep.subr.mxu0 0.0
    %141 = vmatpush1.msra.mxu0 0.0
    %142 = vmatprep.subr.mxu0 0.0
    %143 = vmatpush1.msra.mxu0 0.0
    %144 = vmatprep.subr.mxu0 0.0
    %145 = vmatpush1.msra.mxu0 0.0
    %146 = vmatprep.subr.mxu0 0.0
    %147 = vmatpush1.msra.mxu0 0.0
    %148 = vmatprep.subr.mxu0 0.0
    %149 = vmatpush1.msra.mxu0 0.0
    %150 = vmatprep.subr.mxu0 0.0
    %151 = vmatpush1.msra.mxu0 0.0
    %152 = vmatprep.mubr.f32.mxu0 0.0
    %153 = vmatmul.mubr.f32.gmra.mrb[0].mxu0 %v83
    %v154 = vpop.f32.mrb[0].mxu0
    %v155 = vadd.f32 %v79, %v154
    %v156 = vpop.f32.mrb[0].mxu0
    %157 = vmatprep.mubr.f32.mxu0 0.0
    %158 = vmatmul.mubr.f32.gmra.mrb[0].mxu0 %v86
    %v159 = vpop.f32.mrb[0].mxu0
    %v160 = vadd.f32 %v79, %v159
    %v161 = vpop.f32.mrb[0].mxu0
    %162 = vdwg.mxu0
    %v163 = vld [vmem:[%s7] sm:$0xff]
    %v164 = vld [vmem:[%s7 + $0x8] sm:$0xff]
    %v165 = vld [vmem:[%s8] sm:$0x1]
    %v167 = vlaneseq
    %v168 = vshrl.u32 %v167, 7
    %v169 = vsub.s32 0, %v168
    %v170 = vrot.slane %v165, %v169
    %172 = vmatprep.subr.mxu0 0.0
    %173 = vmatpush1.msra.mxu0 %v163
    %174 = vmatprep.subr.mxu0 0.0
    %175 = vmatpush1.msra.mxu0 %v164
    %176 = vmatprep.subr.mxu0 0.0
    %177 = vmatpush1.msra.mxu0 0.0
    %178 = vmatprep.subr.mxu0 0.0
    %179 = vmatpush1.msra.mxu0 0.0
    %180 = vmatprep.subr.mxu0 0.0
    %181 = vmatpush1.msra.mxu0 0.0
    %182 = vmatprep.subr.mxu0 0.0
    %183 = vmatpush1.msra.mxu0 0.0
    %184 = vmatprep.subr.mxu0 0.0
    %185 = vmatpush1.msra.mxu0 0.0
    %186 = vmatprep.subr.mxu0 0.0
    %187 = vmatpush1.msra.mxu0 0.0
    %188 = vmatprep.subr.mxu0 0.0
    %189 = vmatpush1.msra.mxu0 0.0
    %190 = vmatprep.subr.mxu0 0.0
    %191 = vmatpush1.msra.mxu0 0.0
    %192 = vmatprep.subr.mxu0 0.0
    %193 = vmatpush1.msra.mxu0 0.0
    %194 = vmatprep.subr.mxu0 0.0
    %195 = vmatpush1.msra.mxu0 0.0
    %196 = vmatprep.subr.mxu0 0.0
    %197 = vmatpush1.msra.mxu0 0.0
    %198 = vmatprep.subr.mxu0 0.0
    %199 = vmatpush1.msra.mxu0 0.0
    %200 = vmatprep.subr.mxu0 0.0
    %201 = vmatpush1.msra.mxu0 0.0
    %202 = vmatprep.subr.mxu0 0.0
    %203 = vmatpush1.msra.mxu0 0.0
    %204 = vmatprep.subr.mxu0 0.0
    %205 = vmatpush1.msra.mxu0 0.0
    %206 = vmatprep.subr.mxu0 0.0
    %207 = vmatpush1.msra.mxu0 0.0
    %208 = vmatprep.subr.mxu0 0.0
    %209 = vmatpush1.msra.mxu0 0.0
    %210 = vmatprep.subr.mxu0 0.0
    %211 = vmatpush1.msra.mxu0 0.0
    %212 = vmatprep.subr.mxu0 0.0
    %213 = vmatpush1.msra.mxu0 0.0
    %214 = vmatprep.subr.mxu0 0.0
    %215 = vmatpush1.msra.mxu0 0.0
    %216 = vmatprep.subr.mxu0 0.0
    %217 = vmatpush1.msra.mxu0 0.0
    %218 = vmatprep.subr.mxu0 0.0
    %219 = vmatpush1.msra.mxu0 0.0
    %220 = vmatprep.subr.mxu0 0.0
    %221 = vmatpush1.msra.mxu0 0.0
    %222 = vmatprep.subr.mxu0 0.0
    %223 = vmatpush1.msra.mxu0 0.0
    %224 = vmatprep.subr.mxu0 0.0
    %225 = vmatpush1.msra.mxu0 0.0
    %226 = vmatprep.subr.mxu0 0.0
    %227 = vmatpush1.msra.mxu0 0.0
    %228 = vmatprep.subr.mxu0 0.0
    %229 = vmatpush1.msra.mxu0 0.0
    %230 = vmatprep.subr.mxu0 0.0
    %231 = vmatpush1.msra.mxu0 0.0
    %232 = vmatprep.subr.mxu0 0.0
    %233 = vmatpush1.msra.mxu0 0.0
    %234 = vmatprep.subr.mxu0 0.0
    %235 = vmatpush1.msra.mxu0 0.0
    %236 = vmatprep.mubr.f32.mxu0 0.0
    %237 = vmatmul.mubr.f32.gmra.mrb[0].mxu0 %v83
    %v238 = vpop.f32.mrb[0].mxu0
    %v239 = vadd.f32 %v170, %v238
    %v240 = vpop.f32.mrb[0].mxu0
    %241 = vmatprep.mubr.f32.mxu0 0.0
    %242 = vmatmul.mubr.f32.gmra.mrb[0].mxu0 %v86
    %v243 = vpop.f32.mrb[0].mxu0
    %v244 = vadd.f32 %v170, %v243
    %v245 = vpop.f32.mrb[0].mxu0
    %246 = vdwg.mxu0
    %v247 = vld [vmem:[%s4] sm:$0x1]
    %v249 = vlaneseq
    %v250 = vshrl.u32 %v249, 7
    %v251 = vsub.s32 0, %v250
    %v252 = vrot.slane %v247, %v251
    %v254 = vmul.f32 %v155, %v252
    %v255 = vmul.f32 %v160, %v252
    %vm256 = vcmask 261120
    %v257 = vsel %vm256, %v254, 0.0
    %258 = vadd.xlane.f32.xlu0 %v257
    %v259 = vpop.xlane.xlu0 %258
    %v260 = vsel %vm256, %v255, 0.0
    %261 = vadd.xlane.f32.xlu0 %v260
    %v262 = vpop.xlane.xlu0 %261
    %v263 = vld [vmem:[#allocation3] sm:$0x1]
    %v265 = vlaneseq
    %v266 = vshrl.u32 %v265, 7
    %v267 = vsub.s32 0, %v266
    %v268 = vrot.slane %v263, %v267
    %v270 = vadd.f32 %v259, %v268
    %v271 = vadd.f32 %v262, %v268
    %v272 = vld [vmem:[%s3] sm:$0x1]
    %v273 = vld [vmem:[#allocation2] sm:$0x1]
    %275 = vset.pattern.permute.xlu0 0
    %276 = vperm.xlu0 %275, %v273
    %v277 = vpop.permute.xlu0 %276
    %v279 = vlaneseq
    %v280 = vshrl.u32 %v279, 7
    %v281 = vsub.s32 0, %v280
    %v282 = vrot.slane %v277, %v281
    %v284 = vsel %vm256, %v272, 0
    %v287 = vsel %vm256, %v155, 0
    %289 = vmatprep.subr.mxu0 0.0
    %290 = vmatpush1.xpose.msra.mxu0 %v287
    %291 = vmatprep.subr.mxu0 0.0
    %292 = vmatpush1.xpose.msra.mxu0 0.0
    %293 = vmatprep.subr.mxu0 0.0
    %294 = vmatpush1.xpose.msra.mxu0 0.0
    %295 = vmatprep.subr.mxu0 0.0
    %296 = vmatpush1.xpose.msra.mxu0 0.0
    %297 = vmatprep.subr.mxu0 0.0
    %298 = vmatpush1.xpose.msra.mxu0 0.0
    %299 = vmatprep.subr.mxu0 0.0
    %300 = vmatpush1.xpose.msra.mxu0 0.0
    %301 = vmatprep.subr.mxu0 0.0
    %302 = vmatpush1.xpose.msra.mxu0 0.0
    %303 = vmatprep.subr.mxu0 0.0
    %304 = vmatpush1.xpose.msra.mxu0 0.0
    %305 = vmatprep.subr.mxu0 0.0
    %306 = vmatpush1.xpose.msra.mxu0 0.0
    %307 = vmatprep.subr.mxu0 0.0
    %308 = vmatpush1.xpose.msra.mxu0 0.0
    %309 = vmatprep.subr.mxu0 0.0
    %310 = vmatpush1.xpose.msra.mxu0 0.0
    %311 = vmatprep.subr.mxu0 0.0
    %312 = vmatpush1.xpose.msra.mxu0 0.0
    %313 = vmatprep.subr.mxu0 0.0
    %314 = vmatpush1.xpose.msra.mxu0 0.0
    %315 = vmatprep.subr.mxu0 0.0
    %316 = vmatpush1.xpose.msra.mxu0 0.0
    %317 = vmatprep.subr.mxu0 0.0
    %318 = vmatpush1.xpose.msra.mxu0 0.0
    %319 = vmatprep.subr.mxu0 0.0
    %320 = vmatpush1.xpose.msra.mxu0 0.0
    %321 = vmatprep.subr.mxu0 0.0
    %322 = vmatpush1.xpose.msra.mxu0 0.0
    %323 = vmatprep.subr.mxu0 0.0
    %324 = vmatpush1.xpose.msra.mxu0 0.0
    %325 = vmatprep.subr.mxu0 0.0
    %326 = vmatpush1.xpose.msra.mxu0 0.0
    %327 = vmatprep.subr.mxu0 0.0
    %328 = vmatpush1.xpose.msra.mxu0 0.0
    %329 = vmatprep.subr.mxu0 0.0
    %330 = vmatpush1.xpose.msra.mxu0 0.0
    %331 = vmatprep.subr.mxu0 0.0
    %332 = vmatpush1.xpose.msra.mxu0 0.0
    %333 = vmatprep.subr.mxu0 0.0
    %334 = vmatpush1.xpose.msra.mxu0 0.0
    %335 = vmatprep.subr.mxu0 0.0
    %336 = vmatpush1.xpose.msra.mxu0 0.0
    %337 = vmatprep.subr.mxu0 0.0
    %338 = vmatpush1.xpose.msra.mxu0 0.0
    %339 = vmatprep.subr.mxu0 0.0
    %340 = vmatpush1.xpose.msra.mxu0 0.0
    %341 = vmatprep.subr.mxu0 0.0
    %342 = vmatpush1.xpose.msra.mxu0 0.0
    %343 = vmatprep.subr.mxu0 0.0
    %344 = vmatpush1.xpose.msra.mxu0 0.0
    %345 = vmatprep.subr.mxu0 0.0
    %346 = vmatpush1.xpose.msra.mxu0 0.0
    %347 = vmatprep.subr.mxu0 0.0
    %348 = vmatpush1.xpose.msra.mxu0 0.0
    %349 = vmatprep.subr.mxu0 0.0
    %350 = vmatpush1.xpose.msra.mxu0 0.0
    %351 = vmatprep.subr.mxu0 0.0
    %352 = vmatpush1.xpose.msra.mxu0 0.0
    %353 = vmatprep.mubr.f32.mxu0 0.0
    %354 = vmatmul.mubr.f32.gmra.mrb[0].mxu0 %v284
    %v355 = vpop.f32.mrb[0].mxu0
    %v356 = vadd.f32 %v282, %v355
    %v357 = vpop.f32.mrb[0].mxu0
    %358 = vdwg.mxu0
    %v360 = vsel %vm256, %v160, 0
    %362 = vmatprep.subr.mxu0 0.0
    %363 = vmatpush1.xpose.msra.mxu0 %v360
    %364 = vmatprep.subr.mxu0 0.0
    %365 = vmatpush1.xpose.msra.mxu0 0.0
    %366 = vmatprep.subr.mxu0 0.0
    %367 = vmatpush1.xpose.msra.mxu0 0.0
    %368 = vmatprep.subr.mxu0 0.0
    %369 = vmatpush1.xpose.msra.mxu0 0.0
    %370 = vmatprep.subr.mxu0 0.0
    %371 = vmatpush1.xpose.msra.mxu0 0.0
    %372 = vmatprep.subr.mxu0 0.0
    %373 = vmatpush1.xpose.msra.mxu0 0.0
    %374 = vmatprep.subr.mxu0 0.0
    %375 = vmatpush1.xpose.msra.mxu0 0.0
    %376 = vmatprep.subr.mxu0 0.0
    %377 = vmatpush1.xpose.msra.mxu0 0.0
    %378 = vmatprep.subr.mxu0 0.0
    %379 = vmatpush1.xpose.msra.mxu0 0.0
    %380 = vmatprep.subr.mxu0 0.0
    %381 = vmatpush1.xpose.msra.mxu0 0.0
    %382 = vmatprep.subr.mxu0 0.0
    %383 = vmatpush1.xpose.msra.mxu0 0.0
    %384 = vmatprep.subr.mxu0 0.0
    %385 = vmatpush1.xpose.msra.mxu0 0.0
    %386 = vmatprep.subr.mxu0 0.0
    %387 = vmatpush1.xpose.msra.mxu0 0.0
    %388 = vmatprep.subr.mxu0 0.0
    %389 = vmatpush1.xpose.msra.mxu0 0.0
    %390 = vmatprep.subr.mxu0 0.0
    %391 = vmatpush1.xpose.msra.mxu0 0.0
    %392 = vmatprep.subr.mxu0 0.0
    %393 = vmatpush1.xpose.msra.mxu0 0.0
    %394 = vmatprep.subr.mxu0 0.0
    %395 = vmatpush1.xpose.msra.mxu0 0.0
    %396 = vmatprep.subr.mxu0 0.0
    %397 = vmatpush1.xpose.msra.mxu0 0.0
    %398 = vmatprep.subr.mxu0 0.0
    %399 = vmatpush1.xpose.msra.mxu0 0.0
    %400 = vmatprep.subr.mxu0 0.0
    %401 = vmatpush1.xpose.msra.mxu0 0.0
    %402 = vmatprep.subr.mxu0 0.0
    %403 = vmatpush1.xpose.msra.mxu0 0.0
    %404 = vmatprep.subr.mxu0 0.0
    %405 = vmatpush1.xpose.msra.mxu0 0.0
    %406 = vmatprep.subr.mxu0 0.0
    %407 = vmatpush1.xpose.msra.mxu0 0.0
    %408 = vmatprep.subr.mxu0 0.0
    %409 = vmatpush1.xpose.msra.mxu0 0.0
    %410 = vmatprep.subr.mxu0 0.0
    %411 = vmatpush1.xpose.msra.mxu0 0.0
    %412 = vmatprep.subr.mxu0 0.0
    %413 = vmatpush1.xpose.msra.mxu0 0.0
    %414 = vmatprep.subr.mxu0 0.0
    %415 = vmatpush1.xpose.msra.mxu0 0.0
    %416 = vmatprep.subr.mxu0 0.0
    %417 = vmatpush1.xpose.msra.mxu0 0.0
    %418 = vmatprep.subr.mxu0 0.0
    %419 = vmatpush1.xpose.msra.mxu0 0.0
    %420 = vmatprep.subr.mxu0 0.0
    %421 = vmatpush1.xpose.msra.mxu0 0.0
    %422 = vmatprep.subr.mxu0 0.0
    %423 = vmatpush1.xpose.msra.mxu0 0.0
    %424 = vmatprep.subr.mxu0 0.0
    %425 = vmatpush1.xpose.msra.mxu0 0.0
    %426 = vmatprep.mubr.f32.mxu0 0.0
    %427 = vmatmul.mubr.f32.gmra.mrb[0].mxu0 %v284
    %v428 = vpop.f32.mrb[0].mxu0
    %v429 = vadd.f32 %v282, %v428
    %v430 = vpop.f32.mrb[0].mxu0
    %431 = vdwg.mxu0
    %432 = vst.msk [vmem:[#allocation9] sm:$0xff] %vm256, %v155
    %433 = vst.msk [vmem:[#allocation9 + $0x8] sm:$0xff] %vm256, %v160
    %434 = vst.msk [vmem:[#allocation10] sm:$0xff] %vm256, %v239
    %435 = vst.msk [vmem:[#allocation10 + $0x8] sm:$0xff] %vm256, %v244
    %vm436 = vcmask 57344
    %437 = vst.msk [vmem:[#allocation12] sm:$0x1] %vm436, %v356
    %438 = vst.msk [vmem:[#allocation12 + $0x1] sm:$0x1] %vm436, %v429
    %vm439 = vcmask 7168
    %440 = vst.msk [vmem:[%s12] sm:$0xff] %vm439, %v270
    %441 = vst.msk [vmem:[%s12 + $0x8] sm:$0xff] %vm439, %v271
    // Predicated region
    $region46: #{tpu_custom_call.1} parent=1 // pred_check
      _
    $region47: #{tpu_custom_call.1} parent=1 // pred_check_branch
      %443 = sbr.rel (0) target = $region49
    $region48: #{tpu_custom_call.1} parent=1 // pred_region
      %s445 = ssub.s32 256, 256
      %446 = vsyncadd [#allocation6], %s445
      %s447 = sshll.u32 [#allocation9], 4
      %s448 = int_to_ptr.vmem [resolvable:$true] %s447
      %453 = dma.vmem_to_hbm [thread:$0]  %s448, 256, %s9, [#allocation6], 128, 128, 8
    $region49: #{tpu_custom_call.1} parent=1 // pred_fallthru
      _
    // Predicated region
    $region50: #{tpu_custom_call.1} parent=1 // pred_check
      _
    $region51: #{tpu_custom_call.1} parent=1 // pred_check_branch
      %455 = sbr.rel (0) target = $region53
    $region52: #{tpu_custom_call.1} parent=1 // pred_region
      %s457 = ssub.s32 256, 256
      %458 = vsyncadd [#allocation11], %s457
      %s459 = sshll.u32 [#allocation10], 4
      %s460 = int_to_ptr.vmem [resolvable:$true] %s459
      %465 = dma.vmem_to_hbm [thread:$0]  %s460, 256, %s10, [#allocation11], 128, 128, 8
    $region53: #{tpu_custom_call.1} parent=1 // pred_fallthru
      _
    // Predicated region
    $region54: #{tpu_custom_call.1} parent=1 // pred_check
      _
    $region55: #{tpu_custom_call.1} parent=1 // pred_check_branch
      %467 = sbr.rel (0) target = $region57
    $region56: #{tpu_custom_call.1} parent=1 // pred_region
      %s469 = ssub.s32 32, 32
      %470 = vsyncadd [#allocation11], %s469
      %s471 = sshll.u32 [#allocation12], 4
      %s472 = int_to_ptr.vmem [resolvable:$true] %s471
      %477 = dma.vmem_to_hbm [thread:$0]  %s472, 32, %s11, [#allocation11], 16, 16, 1
    $region57: #{tpu_custom_call.1} parent=1 // pred_fallthru
      _
    // Predicated region
    $region58: #{tpu_custom_call.1} parent=1 // pred_check
      _
    $region59: #{tpu_custom_call.1} parent=1 // pred_check_branch
      %479 = sbr.rel (0) target = $region61
    $region60: #{tpu_custom_call.1} parent=1 // pred_region
      _
    $region61: #{tpu_custom_call.1} parent=1 // pred_fallthru
      _
    // Predicated region
    $region62: #{tpu_custom_call.1} parent=1 // pred_check
      _
    $region63: #{tpu_custom_call.1} parent=1 // pred_check_branch
      %481 = sbr.rel (0) target = $region65
    $region64: #{tpu_custom_call.1} parent=1 // pred_region
      %482 = dma.done [#allocation6], 256
    $region65: #{tpu_custom_call.1} parent=1 // pred_fallthru
      _
    // Predicated region
    $region66: #{tpu_custom_call.1} parent=1 // pred_check
      _
    $region67: #{tpu_custom_call.1} parent=1 // pred_check_branch
      %484 = sbr.rel (0) target = $region69
    $region68: #{tpu_custom_call.1} parent=1 // pred_region
      %485 = dma.done [#allocation11], 256
    $region69: #{tpu_custom_call.1} parent=1 // pred_fallthru
      _
    // Predicated region
    $region70: #{tpu_custom_call.1} parent=1 // pred_check
      _
    $region71: #{tpu_custom_call.1} parent=1 // pred_check_branch
      %487 = sbr.rel (0) target = $region73
    $region72: #{tpu_custom_call.1} parent=1 // pred_region
      %488 = dma.done [#allocation11], 32
    $region73: #{tpu_custom_call.1} parent=1 // pred_fallthru
      _
    // Predicated region
    $region74: #{tpu_custom_call.1} parent=1 // pred_check
      _
    $region75: #{tpu_custom_call.1} parent=1 // pred_check_branch
      %490 = sbr.rel (0) target = $region77
    $region76: #{tpu_custom_call.1} parent=1 // pred_region
      _
    $region77: #{tpu_custom_call.1} parent=1 // pred_fallthru
      _
    %491 = vsyncpa [#allocation5], 1
    %492 = vsyncpa [#allocation8], 1
    %493 = vsyncpa [#allocation6], 1
    %494 = vsyncpa [#allocation11], 1

</llo_original>
